<compile_context>
chip_gen: v6e
topology: v6e:2x2x1
jax: 0.10.0
libtpu: 0.0.40
codegen_flags: <defaults>
</compile_context>

<pallas_src>
import functools

import jax
import jax.numpy as jnp
import numpy as np
from jax.experimental import pallas as pl
from jax.experimental.pallas import tpu as pltpu


def _round_up(x, m):
    return (x + m - 1) // m * m


def _pick_batch_tile(b_pad8: int) -> int:
    """Largest TB = 8*d with d | (b_pad8/8), capped at 128 (256 for big batches)."""
    b8 = b_pad8 // 8
    cap = 32 if b8 >= 32 else 16          # TB up to 256 only for large batches
    best = 1
    for d in range(1, min(b8, cap) + 1):
        if b8 % d == 0:
            best = d
    return 8 * best


def _pick_n_tile(n_pad: int, m: int, scat_itemsize: int) -> int:
    """Largest lane-aligned column band with double-buffered scat tile <= ~8 MiB."""
    for cand in (2048, 1024, 512, 256, 128):
        if cand <= n_pad and 2 * m * cand * scat_itemsize <= (8 << 20):
            return cand
    return min(128, n_pad)


def _cholesky_kernel(vec_ref, mask_ref, scat_ref, o_ref):
    # (TB, M) tril-vector tile; compute in f32.
    v = vec_ref[...].astype(jnp.float32)

    # Numerically-stable softplus: max(v,0) + log1p(exp(-|v|)).
    # log1p is expanded manually (series for tiny z) so very negative diagonal
    # entries do not round to exactly 0, and only exp/log/where are needed.
    z = jnp.exp(-jnp.abs(v))
    log1pz = jnp.where(z < 1e-4, z * (1.0 - 0.5 * z), jnp.log(1.0 + z))
    sp = jnp.maximum(v, 0.0) + log1pz

    # Softplus only on the diagonal slots of the *vector* (pre-scatter).
    is_diag_slot = mask_ref[...] > 0.5            # (1, M) broadcasts over batch
    v_eff = jnp.where(is_diag_slot, sp, v)

    # One-hot scatter on the MXU; scat is stored bf16 (exact 0/1), matmul f32.
    scat = scat_ref[...].astype(jnp.float32)
    o_ref[...] = jnp.dot(v_eff, scat,
                         preferred_element_type=jnp.float32).astype(o_ref.dtype)


def cholesky_forward(L_vec, *, diagonal: bool = False):
    """Pallas implementation of Cholesky.forward.

    L_vec: (B, M) with M = size*(size+1)/2  ->  (B, size, size)
    """
    B, M = L_vec.shape
    size = int(-0.5 + (1 + 8 * M) ** 0.5 / 2)
    assert size * (size + 1) // 2 == M, "L_vec length is not a triangular number"

    N = size * size
    N_pad = _round_up(N, 128)

    in_dtype = L_vec.dtype
    in_bytes = jnp.dtype(in_dtype).itemsize
    scat_bytes = 2                                        # bf16 storage

    B_pad = _round_up(max(B, 1), 8)
    TB = _pick_batch_tile(B_pad)
    TN = _pick_n_tile(N_pad, M, scat_bytes)
    N_total = _round_up(N_pad, TN)

    # Static one-hot scatter matrix: tril slot k -> flat position i*size + j,
    # row-major like torch.tril_indices. For diagonal=True only the diagonal
    # slots scatter (diag_embed of softplus(diag)); off-diag columns stay 0.
    ii, jj = np.tril_indices(size)
    flat = ii * size + jj
    rows = np.arange(M)
    scat_np = np.zeros((M, N_total), dtype=np.float32)
    if diagonal:
        keep = ii == jj
        scat_np[rows[keep], flat[keep]] = 1.0
    else:
        scat_np[rows, flat] = 1.0
    scat = jnp.asarray(scat_np, dtype=jnp.bfloat16)       # exact for 0/1

    # (1, M) mask of diagonal slots in the tril vector (k = tri(i) + i).
    diag_mask_np = np.zeros((1, M), dtype=np.float32)
    diag_mask_np[0, rows[ii == jj]] = 1.0
    diag_mask = jnp.asarray(diag_mask_np)

    # Pad batch only to a multiple of 8 (skip the pad op entirely if aligned).
    vec = L_vec if B_pad == B else jnp.pad(L_vec, ((0, B_pad - B), (0, 0)))

    grid = (N_total // TN, B_pad // TB)                   # (column bands, batch tiles)

    # Explicit VMEM budget from the actual buffers, cross-gen safe ceiling.
    est_vmem = (2 * TB * M * in_bytes                     # vec (double-buffered)
                + 2 * M * 4                               # diag-slot mask
                + 2 * M * TN * scat_bytes                 # scat band (double-buffered)
                + 2 * TB * TN * in_bytes                  # out tile (double-buffered)
                + (TB * M + M * TN + TB * TN) * 4)        # f32 compute temps
    vmem_limit = int(min(max(2 * est_vmem + (4 << 20), 32 << 20), 48 << 20))

    out = pl.pallas_call(
        _cholesky_kernel,
        out_shape=jax.ShapeDtypeStruct((B_pad, N_total), in_dtype),
        grid=grid,
        in_specs=[
            pl.BlockSpec((TB, M), lambda n, b: (b, 0)),   # vector tile (full M)
            pl.BlockSpec((1, M), lambda n, b: (0, 0)),    # diag-slot mask
            pl.BlockSpec((M, TN), lambda n, b: (0, n)),   # scatter column band
        ],
        out_specs=pl.BlockSpec((TB, TN), lambda n, b: (b, n)),
        compiler_params=pltpu.CompilerParams(
            dimension_semantics=("parallel", "parallel"),
            vmem_limit_bytes=vmem_limit,
        ),
        cost_estimate=pl.CostEstimate(
            flops=2 * B_pad * M * N_total,
            transcendentals=2 * B_pad * M * (N_total // TN),
            bytes_accessed=((N_total // TN) * B_pad * M * in_bytes
                            + M * N_total * scat_bytes
                            + M * 4
                            + B_pad * N_total * in_bytes),
        ),
    )(vec, diag_mask, scat)

    return out[:B, :N].reshape(B, size, size)


if __name__ == "__main__":
    # Small shapes consistent with the module: L_vec is (batch, size*(size+1)/2).
    batch = 2
    size = 8
    M = size * (size + 1) // 2   # 36

    key = jax.random.PRNGKey(0)
    L_vec = jax.random.normal(key, (batch, M), dtype=jnp.float32)

    out = jax.block_until_ready(cholesky_forward(L_vec, diagonal=False))
    out_diag = jax.block_until_ready(cholesky_forward(L_vec, diagonal=True))

    # Pure-JAX reference of the module's math.
    def ref(vec, diagonal):
        b, m = vec.shape
        s = int(-0.5 + (1 + 8 * m) ** 0.5 / 2)
        i, j = np.tril_indices(s)
        L = jnp.zeros((b, s, s), vec.dtype).at[:, i, j].add(vec)
        below = jnp.tril(L, k=-1)
        d = jax.nn.softplus(jnp.diagonal(L, axis1=-2, axis2=-1))
        Ld = jnp.zeros((b, s, s), vec.dtype).at[:, np.arange(s), np.arange(s)].set(d)
        return Ld if diagonal else Ld + below

    r = ref(L_vec, False)
    rd = ref(L_vec, True)

    assert out.shape == (batch, size, size)
    assert out_diag.shape == (batch, size, size)
    assert jnp.allclose(out, r, atol=1e-5, rtol=1e-5)
    assert jnp.allclose(out_diag, rd, atol=1e-5, rtol=1e-5)
    # Structural checks: lower-triangular with strictly positive diagonal.
    assert jnp.allclose(jnp.triu(out, k=1), 0.0)
    assert bool(jnp.all(jnp.diagonal(out, axis1=-2, axis2=-1) > 0))

    print("KERNEL_OK")
</pallas_src>

<mosaic_0001>
module attributes {stable_mosaic.version = 11 : i64} {
  func.func @_cholesky_kernel(%arg0: i32, %arg1: i32, %arg2: memref<8x36xf32, #tpu.memory_space<vmem>>, %arg3: memref<1x36xf32, #tpu.memory_space<vmem>>, %arg4: memref<36x128xbf16, #tpu.memory_space<vmem>>, %arg5: memref<8x128xf32, #tpu.memory_space<vmem>>) attributes {dimension_semantics = [#tpu.dimension_semantics<parallel>, #tpu.dimension_semantics<parallel>], iteration_bounds = array<i64: 1, 1>, scalar_prefetch = 0 : i64, scratch_operands = 0 : i64, tpu.core_type = #tpu.core_type<tc>, window_params = [{transform_indices = @transform_0, window_bounds = array<i64: 8, 36>}, {pipeline_mode = #tpu.pipeline_mode<synchronous>, transform_indices = @transform_1, window_bounds = array<i64: 1, 36>}, {transform_indices = @transform_2, window_bounds = array<i64: 36, 128>}, {transform_indices = @transform_3, window_bounds = array<i64: 8, 128>}]} {
    %c0 = arith.constant 0 : index
    %c0_0 = arith.constant 0 : index
    %0 = vector.load %arg2[%c0, %c0_0] : memref<8x36xf32, #tpu.memory_space<vmem>>, vector<8x36xf32>
    %1 = math.absf %0 : vector<8x36xf32>
    %cst = arith.constant 0.000000e+00 : f32
    %2 = vector.broadcast %cst : f32 to vector<8x36xf32>
    %3 = arith.subf %2, %1 : vector<8x36xf32>
    %4 = math.exp %3 : vector<8x36xf32>
    %cst_1 = arith.constant 9.99999974E-5 : f32
    %5 = vector.broadcast %cst_1 : f32 to vector<8x36xf32>
    %6 = arith.cmpf olt, %4, %5 : vector<8x36xf32>
    %cst_2 = arith.constant 5.000000e-01 : f32
    %7 = vector.broadcast %cst_2 : f32 to vector<8x36xf32>
    %8 = arith.mulf %7, %4 : vector<8x36xf32>
    %cst_3 = arith.constant 1.000000e+00 : f32
    %9 = vector.broadcast %cst_3 : f32 to vector<8x36xf32>
    %10 = arith.subf %9, %8 : vector<8x36xf32>
    %11 = arith.mulf %4, %10 : vector<8x36xf32>
    %cst_4 = arith.constant 1.000000e+00 : f32
    %12 = vector.broadcast %cst_4 : f32 to vector<8x36xf32>
    %13 = arith.addf %12, %4 : vector<8x36xf32>
    %14 = math.log %13 : vector<8x36xf32>
    %15 = arith.select %6, %11, %14 : vector<8x36xi1>, vector<8x36xf32>
    %cst_5 = arith.constant 0.000000e+00 : f32
    %16 = vector.broadcast %cst_5 : f32 to vector<8x36xf32>
    %17 = arith.maximumf %0, %16 : vector<8x36xf32>
    %18 = arith.addf %17, %15 : vector<8x36xf32>
    %c0_6 = arith.constant 0 : index
    %c0_7 = arith.constant 0 : index
    %19 = vector.load %arg3[%c0_6, %c0_7] : memref<1x36xf32, #tpu.memory_space<vmem>>, vector<1x36xf32>
    %cst_8 = arith.constant 5.000000e-01 : f32
    %20 = vector.broadcast %cst_8 : f32 to vector<1x36xf32>
    %21 = arith.cmpf ogt, %19, %20 : vector<1x36xf32>
    %22 = vector.shape_cast %21 : vector<1x36xi1> to vector<1x36xi1>
    %23 = vector.broadcast %22 : vector<1x36xi1> to vector<8x36xi1>
    %24 = arith.select %23, %18, %0 : vector<8x36xi1>, vector<8x36xf32>
    %c0_9 = arith.constant 0 : index
    %c0_10 = arith.constant 0 : index
    %25 = vector.load %arg4[%c0_9, %c0_10] : memref<36x128xbf16, #tpu.memory_space<vmem>>, vector<36x128xbf16>
    %26 = arith.extf %25 : vector<36x128xbf16> to vector<36x128xf32>
    %cst_11 = arith.constant dense<0.000000e+00> : vector<8x128xf32>
    %27 = tpu.matmul %24, %26, %cst_11 {dimension_numbers = #tpu.dot_dimension_numbers<[1], [0], [0], [1], [0, 0, 1, 1], [], []>} : vector<8x36xf32>, vector<36x128xf32>, vector<8x128xf32> -> vector<8x128xf32>
    %c0_12 = arith.constant 0 : index
    %c0_13 = arith.constant 0 : index
    %28 = vector.load %arg5[%c0_12, %c0_13] : memref<8x128xf32, #tpu.memory_space<vmem>>, vector<8x128xf32>
    tpu.vector_store %arg5[%c0_12, %c0_13], %27 {strides = array<i32>} : memref<8x128xf32, #tpu.memory_space<vmem>>, vector<8x128xf32>,
    return
  }
  func.func @transform_0(%arg0: i32, %arg1: i32) -> (i32, i32) {
    %c0_i32 = arith.constant 0 : i32
    %c0_i32_0 = arith.constant 0 : i32
    return %arg1, %c0_i32 : i32, i32
  }
  func.func @transform_1(%arg0: i32, %arg1: i32) -> (i32, i32) {
    %c0_i32 = arith.constant 0 : i32
    %c0_i32_0 = arith.constant 0 : i32
    %c0_i32_1 = arith.constant 0 : i32
    return %c0_i32, %c0_i32_0 : i32, i32
  }
  func.func @transform_2(%arg0: i32, %arg1: i32) -> (i32, i32) {
    %c0_i32 = arith.constant 0 : i32
    %c0_i32_0 = arith.constant 0 : i32
    return %c0_i32, %arg0 : i32, i32
  }
  func.func @transform_3(%arg0: i32, %arg1: i32) -> (i32, i32) {
    %c0_i32 = arith.constant 0 : i32
    return %arg1, %arg0 : i32, i32
  }
}

</mosaic_0001>

<llo_original>
// kernel: tpu_custom_call.1
$region0: #{tpu_custom_call.1}
  #allocation0 [shape = 'u32[]', space=smem, size = 0x4, offset = 0x4, fixed_abs, tag = 'smem constant byte address 0x4 - core index']
  #allocation1 [shape = 'u32[144,128]{1,0:T(1,128)}', space=vmem, size = 0x12000, scoped, tag = 'internal scratch']
  %s0 = inlined_call_operand.hbm [shape: f32[8,36], index: 0, kind: input, shape index: {}]
  %s1 = inlined_call_operand.vmem [shape: f32[1,36], index: 1, kind: input, shape index: {}]
  %s2 = inlined_call_operand.hbm [shape: bf16[36,128], index: 2, kind: input, shape index: {}]
  %s3 = inlined_call_operand.hbm [shape: f32[8,128], index: 3, kind: output, shape index: {}]
  %s4 = sld [smem:[#allocation0]]
  $region30: #{tpu_custom_call.1} parent=0
    _
  %s6 = ssub.s32 1, %s4
  %s7 = scalar_select 0, %s6, %s4
  $region1: #{tpu_custom_call.1} parent=0
    #allocation2 [shape = 'u8[4096]{0}', space=vmem, size = 0x1000, scoped, tag = 'input window, operand 0, single buffered']
    #allocation3 [shape = 's32[1]{0}', space=sflag, size = 0x4, scoped, tag = 'scoped memory for tpu_custom_call.1']
    #allocation4 [shape = 's32[1]{0}', space=sflag, size = 0x4, scoped, tag = 'scoped memory for tpu_custom_call.1']
    #allocation5 [shape = 'u8[10240]{0}', space=vmem, size = 0x2800, scoped, tag = 'input window, operand 2, single buffered']
    #allocation6 [shape = 's32[1]{0}', space=sflag, size = 0x4, scoped, tag = 'scoped memory for tpu_custom_call.1']
    #allocation7 [shape = 'u8[4096]{0}', space=vmem, size = 0x1000, scoped, tag = 'output window, operand 0, single buffered']
    %8 = vsyncpa [#allocation3], 0
    %9 = vsyncpa [#allocation6], 0
    %10 = vsyncpa [#allocation4], 0
    // Predicated region
    $region2: #{tpu_custom_call.1} parent=1 // pred_check
      _
    $region3: #{tpu_custom_call.1} parent=1 // pred_check_branch
      %12 = sbr.rel (0) target = $region5
    $region4: #{tpu_custom_call.1} parent=1 // pred_region
      %s14 = ssub.s32 128, 128
      %15 = vsyncadd [#allocation3], %s14
      %s17 = sshll.u32 [#allocation2], 4
      %s18 = int_to_ptr.vmem [resolvable:$true] %s17
      %20 = dma.hbm_to_vmem [thread:$0]  %s0, 128, %s18, [#allocation3]
    $region5: #{tpu_custom_call.1} parent=1 // pred_fallthru
      _
    // Predicated region
    $region6: #{tpu_custom_call.1} parent=1 // pred_check
      _
    $region7: #{tpu_custom_call.1} parent=1 // pred_check_branch
      %22 = sbr.rel (0) target = $region9
    $region8: #{tpu_custom_call.1} parent=1 // pred_region
      _
    $region9: #{tpu_custom_call.1} parent=1 // pred_fallthru
      _
    // Predicated region
    $region10: #{tpu_custom_call.1} parent=1 // pred_check
      _
    $region11: #{tpu_custom_call.1} parent=1 // pred_check_branch
      %24 = sbr.rel (0) target = $region13
    $region12: #{tpu_custom_call.1} parent=1 // pred_region
      %s26 = ssub.s32 320, 320
      %27 = vsyncadd [#allocation6], %s26
      %s28 = sshll.u32 [#allocation5], 4
      %s29 = int_to_ptr.vmem [resolvable:$true] %s28
      %34 = dma.hbm_to_vmem [thread:$0]  %s2, 320, %s29, [#allocation6], 64, 64, 4
    $region13: #{tpu_custom_call.1} parent=1 // pred_fallthru
      _
    // Predicated region
    $region14: #{tpu_custom_call.1} parent=1 // pred_check
      _
    $region15: #{tpu_custom_call.1} parent=1 // pred_check_branch
      %36 = sbr.rel (0) target = $region17
    $region16: #{tpu_custom_call.1} parent=1 // pred_region
      %37 = dma.done [#allocation3], 128
    $region17: #{tpu_custom_call.1} parent=1 // pred_fallthru
      _
    // Predicated region
    $region18: #{tpu_custom_call.1} parent=1 // pred_check
      _
    $region19: #{tpu_custom_call.1} parent=1 // pred_check_branch
      %39 = sbr.rel (0) target = $region21
    $region20: #{tpu_custom_call.1} parent=1 // pred_region
      %40 = dma.done [#allocation6], 320
    $region21: #{tpu_custom_call.1} parent=1 // pred_fallthru
      _
    %v41 = vld [vmem:[#allocation2] sm:$0xff]
    %v42 = vand.u32 2147483647, %v41
    %v43 = vsub.f32 0.0, %v42
    %v44 = vmul.f32 %v43, 1.442695
    %v45 = vpow.pop %v44
    %vm46 = vcmp.lt.f32.partialorder %v45, 0.0001
    %v47 = vmul.f32 %v45, 0.5
    %v48 = vsub.f32 1.0, %v47
    %v49 = vmul.f32 %v45, %v48
    %v50 = vadd.f32 %v45, 1.0
    %v51 = vlog2.pop %v50
    %v52 = vmul.f32 %v51, 0.6931472
    %v53 = vsel %vm46, %v49, %v52
    %v54 = vmax.f32 %v41, 0.0
    %v55 = vadd.f32 %v54, %v53
    %v56 = vld [vmem:[%s1] sm:$0x1]
    %vm57 = vcmp.gt.f32.partialorder %v56, 0.5
    %v58 = vsel %vm57, 1, 0
    %v59 = vlaneseq
    %v60 = vshrl.u32 %v59, 7
    %v61 = vsub.s32 0, %v60
    %v62 = vrot.slane %v58, %v61
    %vm63 = vcmp.eq.s32.totalorder %v62, 1
    %v64 = vsel %vm63, %v55, %v41
    %v65 = vld [vmem:[#allocation5] sm:$0xf]
    %v66 = vld [vmem:[#allocation5 + $0x4] sm:$0xf]
    %v67 = vld [vmem:[#allocation5 + $0x8] sm:$0xf]
    %v68 = vld [vmem:[#allocation5 + $0xc] sm:$0xf]
    %v69 = vld [vmem:[#allocation5 + $0x10] sm:$0x3]
    %v70 = vunpack.c.l.bf16 %v65
    %v71 = vunpack.c.l.bf16 %v66
    %v72 = vunpack.c.l.bf16 %v67
    %v73 = vunpack.c.l.bf16 %v68
    %v74 = vunpack.c.l.bf16 %v69
    %vm75 = vcmask 293888
    %v77 = vsel %vm75, %v64, 0
    %vm79 = vcmask 1043456
    %v81 = vsel %vm79, %v74, 0
    %83 = vmatprep.subr.mxu0 0.0
    %84 = vmatpush1.msra.mxu0 0.0
    %85 = vmatprep.subr.mxu0 0.0
    %86 = vmatpush1.msra.mxu0 0.0
    %87 = vmatprep.subr.mxu0 0.0
    %88 = vmatpush1.msra.mxu0 0.0
    %89 = vmatprep.subr.mxu0 0.0
    %90 = vmatpush1.msra.mxu0 0.0
    %91 = vmatprep.subr.mxu0 0.0
    %92 = vmatpush1.msra.mxu0 0.0
    %93 = vmatprep.subr.mxu0 0.0
    %94 = vmatpush1.msra.mxu0 0.0
    %95 = vmatprep.subr.mxu0 0.0
    %96 = vmatpush1.msra.mxu0 0.0
    %97 = vmatprep.subr.mxu0 0.0
    %98 = vmatpush1.msra.mxu0 0.0
    %99 = vmatprep.subr.mxu0 0.0
    %100 = vmatpush1.msra.mxu0 0.0
    %101 = vmatprep.subr.mxu0 0.0
    %102 = vmatpush1.msra.mxu0 0.0
    %103 = vmatprep.subr.mxu0 0.0
    %104 = vmatpush1.msra.mxu0 0.0
    %105 = vmatprep.subr.mxu0 0.0
    %106 = vmatpush1.msra.mxu0 %v81
    %107 = vmatprep.subr.mxu0 0.0
    %108 = vmatpush1.msra.mxu0 %v73
    %109 = vmatprep.subr.mxu0 0.0
    %110 = vmatpush1.msra.mxu0 %v72
    %111 = vmatprep.subr.mxu0 0.0
    %112 = vmatpush1.msra.mxu0 %v71
    %113 = vmatprep.subr.mxu0 0.0
    %114 = vmatpush1.msra.mxu0 %v70
    %115 = vmatprep.subr.mxu0 0.0
    %116 = vmatpush2.msra.mxu0 0.0
    %117 = vmatprep.subr.mxu0 0.0
    %118 = vmatpush2.msra.mxu0 0.0
    %119 = vmatprep.subr.mxu0 0.0
    %120 = vmatpush2.msra.mxu0 0.0
    %121 = vmatprep.subr.mxu0 0.0
    %122 = vmatpush2.msra.mxu0 0.0
    %123 = vmatprep.subr.mxu0 0.0
    %124 = vmatpush2.msra.mxu0 0.0
    %125 = vmatprep.subr.mxu0 0.0
    %126 = vmatpush2.msra.mxu0 0.0
    %127 = vmatprep.subr.mxu0 0.0
    %128 = vmatpush2.msra.mxu0 0.0
    %129 = vmatprep.subr.mxu0 0.0
    %130 = vmatpush2.msra.mxu0 0.0
    %131 = vmatprep.subr.mxu0 0.0
    %132 = vmatpush2.msra.mxu0 0.0
    %133 = vmatprep.subr.mxu0 0.0
    %134 = vmatpush2.msra.mxu0 0.0
    %135 = vmatprep.subr.mxu0 0.0
    %136 = vmatpush2.msra.mxu0 0.0
    %137 = vmatprep.subr.mxu0 0.0
    %138 = vmatpush2.msra.mxu0 0.0
    %139 = vmatprep.subr.mxu0 0.0
    %140 = vmatpush2.msra.mxu0 0.0
    %141 = vmatprep.subr.mxu0 0.0
    %142 = vmatpush2.msra.mxu0 0.0
    %143 = vmatprep.subr.mxu0 0.0
    %144 = vmatpush2.msra.mxu0 0.0
    %145 = vmatprep.subr.mxu0 0.0
    %146 = vmatpush2.msra.mxu0 0.0
    %147 = vmatprep.mubr.f32.mxu0 0.0
    %148 = vmatmul.mubr.f32.gmra.mxu0 %v77
    %v149 = vpop.f32.mrf.mxu0
    %v150 = vadd.f32 0.0, %v149
    %v151 = vpop.f32.mrf.mxu0
    %152 = vdwg.mxu0
    %153 = vst [vmem:[#allocation7] sm:$0xff] %v150
    // Predicated region
    $region22: #{tpu_custom_call.1} parent=1 // pred_check
      _
    $region23: #{tpu_custom_call.1} parent=1 // pred_check_branch
      %155 = sbr.rel (0) target = $region25
    $region24: #{tpu_custom_call.1} parent=1 // pred_region
      %s157 = ssub.s32 128, 128
      %158 = vsyncadd [#allocation4], %s157
      %s160 = sshll.u32 [#allocation7], 4
      %s161 = int_to_ptr.vmem [resolvable:$true] %s160
      %163 = dma.vmem_to_hbm [thread:$0]  %s161, 128, %s3, [#allocation4]
    $region25: #{tpu_custom_call.1} parent=1 // pred_fallthru
      _
    // Predicated region
    $region26: #{tpu_custom_call.1} parent=1 // pred_check
      _
    $region27: #{tpu_custom_call.1} parent=1 // pred_check_branch
      %165 = sbr.rel (0) target = $region29
    $region28: #{tpu_custom_call.1} parent=1 // pred_region
      %166 = dma.done [#allocation4], 128
    $region29: #{tpu_custom_call.1} parent=1 // pred_fallthru
      _
    %167 = vsyncpa [#allocation3], 1
    %168 = vsyncpa [#allocation6], 1
    %169 = vsyncpa [#allocation4], 1

</llo_original>
